<compile_context>
chip_gen: v6e
topology: v6e:2x2x1
jax: 0.10.0
libtpu: 0.0.40
codegen_flags: <defaults>
</compile_context>

<pallas_src>
import functools

import jax
import jax.numpy as jnp
from jax.experimental import pallas as pl
from jax.experimental.pallas import tpu as pltpu


def _round_up(v, m):
    return (v + m - 1) // m * m


def _layer_connect_kernel(x_ref, m_ref, w_ref, b_ref, g_ref, beta_ref, o_ref,
                          *, eps):
    x = x_ref[...].astype(jnp.float32)                         # (tm, D)

    # --- sublayer: dense projection (MXU, bf16 in / f32 accumulate) ---
    y = jnp.dot(x.astype(jnp.bfloat16), w_ref[...],
                preferred_element_type=jnp.float32)
    y = y + b_ref[...]                                         # (1, D) broadcast

    # --- dropout: precomputed multiplier tile (0 or 1/(1-p)) ---
    y = y * m_ref[...]

    # --- residual add ---
    z = x + y                                                  # (tm, D)

    # --- LayerNorm over last dim (biased variance, like torch) ---
    mean = jnp.mean(z, axis=-1, keepdims=True)
    zc = z - mean
    var = jnp.mean(zc * zc, axis=-1, keepdims=True)
    out = zc * jax.lax.rsqrt(var + eps) * g_ref[...] + beta_ref[...]

    o_ref[...] = out.astype(o_ref.dtype)


def layer_connect(x, w, b, gamma, beta, *, dropout_p, key, eps=1e-5, tm=256):
    """x: (B, S, D) float32.  Returns LayerNorm(x + dropout(x @ w + b))."""
    B, S, D = x.shape
    M = B * S

    # Row tile: big for MXU / pipeline efficiency, clamped for small inputs,
    # always a multiple of 8 (sublane).  Pad M up to a multiple of tm.
    tm = min(tm, _round_up(M, 8))
    Mp = _round_up(M, tm)

    x2 = x.reshape(M, D).astype(jnp.float32)

    # Dropout multiplier (train-mode keep-prob scaling), precomputed outside
    # the kernel so it also runs under interpret mode.
    if dropout_p > 0.0:
        keep = jax.random.bernoulli(key, 1.0 - float(dropout_p), (M, D))
        mask = keep.astype(jnp.float32) * (1.0 / (1.0 - float(dropout_p)))
    else:
        mask = jnp.ones((M, D), jnp.float32)

    if Mp != M:
        pad = Mp - M
        x2 = jnp.pad(x2, ((0, pad), (0, 0)))
        mask = jnp.pad(mask, ((0, pad), (0, 0)))

    w_bf16 = w.astype(jnp.bfloat16)
    b2 = b.reshape(1, D).astype(jnp.float32)
    g2 = gamma.reshape(1, D).astype(jnp.float32)
    beta2 = beta.reshape(1, D).astype(jnp.float32)

    kernel = functools.partial(_layer_connect_kernel, eps=float(eps))

    # VMEM budget: double-buffered (x, mask, out) tiles + resident bf16 W
    # + small params + headroom; capped at v7x's 64 MiB physical VMEM.
    vmem_bytes = 2 * (3 * tm * D * 4) + 2 * D * D * 2 + 6 * D * 4 + (8 << 20)
    vmem_bytes = int(min(vmem_bytes, 64 << 20))

    cost = pl.CostEstimate(
        flops=2 * Mp * D * D,
        transcendentals=Mp,
        bytes_accessed=3 * Mp * D * 4 + D * D * 2 + 3 * D * 4,
    )

    out = pl.pallas_call(
        kernel,
        out_shape=jax.ShapeDtypeStruct((Mp, D), x.dtype),
        grid_spec=pltpu.PrefetchScalarGridSpec(
            num_scalar_prefetch=0,
            grid=(Mp // tm,),
            in_specs=[
                pl.BlockSpec((tm, D), lambda i: (i, 0)),   # x tile
                pl.BlockSpec((tm, D), lambda i: (i, 0)),   # dropout multiplier
                pl.BlockSpec((D, D),  lambda i: (0, 0)),   # W (resident, bf16)
                pl.BlockSpec((1, D),  lambda i: (0, 0)),   # b
                pl.BlockSpec((1, D),  lambda i: (0, 0)),   # gamma
                pl.BlockSpec((1, D),  lambda i: (0, 0)),   # beta
            ],
            out_specs=pl.BlockSpec((tm, D), lambda i: (i, 0)),
        ),
        compiler_params=pltpu.CompilerParams(
            dimension_semantics=("parallel",),   # tiles fully independent
            vmem_limit_bytes=vmem_bytes,
        ),
        cost_estimate=cost,
    )(x2, mask, w_bf16, b2, g2, beta2)

    return out[:M].reshape(B, S, D)


if __name__ == "__main__":
    B, S, D = 2, 64, 128        # lane-dense hidden size (multiple of 128)
    dropout_p = 0.1

    key = jax.random.PRNGKey(0)
    kx, kw, kb, kdrop = jax.random.split(key, 4)

    x = jax.random.normal(kx, (B, S, D), dtype=jnp.float32)
    # sublayer (Linear) params, deterministic
    w = jax.random.normal(kw, (D, D), dtype=jnp.float32) * 0.05
    b = jax.random.normal(kb, (D,), dtype=jnp.float32) * 0.01
    # nn.LayerNorm(size) default init: weight=1, bias=0
    gamma = jnp.ones((D,), dtype=jnp.float32)
    beta = jnp.zeros((D,), dtype=jnp.float32)

    out = layer_connect(x, w, b, gamma, beta, dropout_p=dropout_p, key=kdrop)
    out = jax.block_until_ready(out)
    assert out.shape == (B, S, D) and out.dtype == jnp.float32
    assert bool(jnp.all(jnp.isfinite(out)))
    print("KERNEL_OK")
</pallas_src>

<mosaic_0001>
module attributes {stable_mosaic.version = 11 : i64} {
  func.func @_layer_connect_kernel(%arg0: i32, %arg1: memref<128x128xf32, #tpu.memory_space<vmem>>, %arg2: memref<128x128xf32, #tpu.memory_space<vmem>>, %arg3: memref<128x128xbf16, #tpu.memory_space<vmem>>, %arg4: memref<1x128xf32, #tpu.memory_space<vmem>>, %arg5: memref<1x128xf32, #tpu.memory_space<vmem>>, %arg6: memref<1x128xf32, #tpu.memory_space<vmem>>, %arg7: memref<128x128xf32, #tpu.memory_space<vmem>>) attributes {dimension_semantics = [#tpu.dimension_semantics<parallel>], iteration_bounds = array<i64: 1>, scalar_prefetch = 0 : i64, scratch_operands = 0 : i64, tpu.core_type = #tpu.core_type<tc>, window_params = [{transform_indices = @transform_0, window_bounds = array<i64: 128, 128>}, {transform_indices = @transform_1, window_bounds = array<i64: 128, 128>}, {pipeline_mode = #tpu.pipeline_mode<synchronous>, transform_indices = @transform_2, window_bounds = array<i64: 128, 128>}, {pipeline_mode = #tpu.pipeline_mode<synchronous>, transform_indices = @transform_3, window_bounds = array<i64: 1, 128>}, {pipeline_mode = #tpu.pipeline_mode<synchronous>, transform_indices = @transform_4, window_bounds = array<i64: 1, 128>}, {pipeline_mode = #tpu.pipeline_mode<synchronous>, transform_indices = @transform_5, window_bounds = array<i64: 1, 128>}, {transform_indices = @transform_6, window_bounds = array<i64: 128, 128>}]} {
    %c0 = arith.constant 0 : index
    %c0_0 = arith.constant 0 : index
    %0 = vector.load %arg1[%c0, %c0_0] : memref<128x128xf32, #tpu.memory_space<vmem>>, vector<128x128xf32>
    %1 = arith.truncf %0 : vector<128x128xf32> to vector<128x128xbf16>
    %c0_1 = arith.constant 0 : index
    %c0_2 = arith.constant 0 : index
    %2 = vector.load %arg3[%c0_1, %c0_2] : memref<128x128xbf16, #tpu.memory_space<vmem>>, vector<128x128xbf16>
    %cst = arith.constant dense<0.000000e+00> : vector<128x128xf32>
    %3 = tpu.matmul %1, %2, %cst {dimension_numbers = #tpu.dot_dimension_numbers<[1], [0], [0], [1], [0, 0, 1, 1], [], []>} : vector<128x128xbf16>, vector<128x128xbf16>, vector<128x128xf32> -> vector<128x128xf32>
    %c0_3 = arith.constant 0 : index
    %c0_4 = arith.constant 0 : index
    %4 = vector.load %arg4[%c0_3, %c0_4] : memref<1x128xf32, #tpu.memory_space<vmem>>, vector<1x128xf32>
    %5 = vector.broadcast %4 : vector<1x128xf32> to vector<128x128xf32>
    %6 = arith.addf %3, %5 : vector<128x128xf32>
    %c0_5 = arith.constant 0 : index
    %c0_6 = arith.constant 0 : index
    %7 = vector.load %arg2[%c0_5, %c0_6] : memref<128x128xf32, #tpu.memory_space<vmem>>, vector<128x128xf32>
    %8 = arith.mulf %6, %7 : vector<128x128xf32>
    %9 = arith.addf %0, %8 : vector<128x128xf32>
    %cst_7 = arith.constant dense<0.000000e+00> : vector<128xf32>
    %10 = vector.multi_reduction <add>, %9, %cst_7 [1] : vector<128x128xf32> to vector<128xf32>
    %11 = vector.shape_cast %10 : vector<128xf32> to vector<128x1xf32>
    %cst_8 = arith.constant 1.280000e+02 : f32
    %12 = vector.broadcast %cst_8 : f32 to vector<128x1xf32>
    %13 = arith.divf %11, %12 : vector<128x1xf32>
    %14 = vector.broadcast %13 : vector<128x1xf32> to vector<128x128xf32>
    %15 = arith.subf %9, %14 : vector<128x128xf32>
    %16 = arith.mulf %15, %15 : vector<128x128xf32>
    %cst_9 = arith.constant dense<0.000000e+00> : vector<128xf32>
    %17 = vector.multi_reduction <add>, %16, %cst_9 [1] : vector<128x128xf32> to vector<128xf32>
    %18 = vector.shape_cast %17 : vector<128xf32> to vector<128x1xf32>
    %cst_10 = arith.constant 1.280000e+02 : f32
    %19 = vector.broadcast %cst_10 : f32 to vector<128x1xf32>
    %20 = arith.divf %18, %19 : vector<128x1xf32>
    %cst_11 = arith.constant 9.99999974E-6 : f32
    %21 = vector.broadcast %cst_11 : f32 to vector<128x1xf32>
    %22 = arith.addf %20, %21 : vector<128x1xf32>
    %23 = math.rsqrt %22 : vector<128x1xf32>
    %24 = vector.broadcast %23 : vector<128x1xf32> to vector<128x128xf32>
    %25 = arith.mulf %15, %24 : vector<128x128xf32>
    %c0_12 = arith.constant 0 : index
    %c0_13 = arith.constant 0 : index
    %26 = vector.load %arg5[%c0_12, %c0_13] : memref<1x128xf32, #tpu.memory_space<vmem>>, vector<1x128xf32>
    %27 = vector.broadcast %26 : vector<1x128xf32> to vector<128x128xf32>
    %28 = arith.mulf %25, %27 : vector<128x128xf32>
    %c0_14 = arith.constant 0 : index
    %c0_15 = arith.constant 0 : index
    %29 = vector.load %arg6[%c0_14, %c0_15] : memref<1x128xf32, #tpu.memory_space<vmem>>, vector<1x128xf32>
    %30 = vector.broadcast %29 : vector<1x128xf32> to vector<128x128xf32>
    %31 = arith.addf %28, %30 : vector<128x128xf32>
    %c0_16 = arith.constant 0 : index
    %c0_17 = arith.constant 0 : index
    %32 = vector.load %arg7[%c0_16, %c0_17] : memref<128x128xf32, #tpu.memory_space<vmem>>, vector<128x128xf32>
    tpu.vector_store %arg7[%c0_16, %c0_17], %31 {strides = array<i32>} : memref<128x128xf32, #tpu.memory_space<vmem>>, vector<128x128xf32>,
    return
  }
  func.func @transform_0(%arg0: i32) -> (i32, i32) {
    %c0_i32 = arith.constant 0 : i32
    %c0_i32_0 = arith.constant 0 : i32
    return %arg0, %c0_i32 : i32, i32
  }
  func.func @transform_1(%arg0: i32) -> (i32, i32) {
    %c0_i32 = arith.constant 0 : i32
    %c0_i32_0 = arith.constant 0 : i32
    return %arg0, %c0_i32 : i32, i32
  }
  func.func @transform_2(%arg0: i32) -> (i32, i32) {
    %c0_i32 = arith.constant 0 : i32
    %c0_i32_0 = arith.constant 0 : i32
    %c0_i32_1 = arith.constant 0 : i32
    return %c0_i32, %c0_i32_0 : i32, i32
  }
  func.func @transform_3(%arg0: i32) -> (i32, i32) {
    %c0_i32 = arith.constant 0 : i32
    %c0_i32_0 = arith.constant 0 : i32
    %c0_i32_1 = arith.constant 0 : i32
    return %c0_i32, %c0_i32_0 : i32, i32
  }
  func.func @transform_4(%arg0: i32) -> (i32, i32) {
    %c0_i32 = arith.constant 0 : i32
    %c0_i32_0 = arith.constant 0 : i32
    %c0_i32_1 = arith.constant 0 : i32
    return %c0_i32, %c0_i32_0 : i32, i32
  }
  func.func @transform_5(%arg0: i32) -> (i32, i32) {
    %c0_i32 = arith.constant 0 : i32
    %c0_i32_0 = arith.constant 0 : i32
    %c0_i32_1 = arith.constant 0 : i32
    return %c0_i32, %c0_i32_0 : i32, i32
  }
  func.func @transform_6(%arg0: i32) -> (i32, i32) {
    %c0_i32 = arith.constant 0 : i32
    %c0_i32_0 = arith.constant 0 : i32
    return %arg0, %c0_i32 : i32, i32
  }
}

</mosaic_0001>

<llo_original>
// kernel: tpu_custom_call.1
$region0: #{tpu_custom_call.1}
  #allocation0 [shape = 'u32[]', space=smem, size = 0x4, offset = 0x4, fixed_abs, tag = 'smem constant byte address 0x4 - core index']
  #allocation1 [shape = 'u32[144,128]{1,0:T(1,128)}', space=vmem, size = 0x12000, scoped, tag = 'internal scratch']
  %s0 = inlined_call_operand.hbm [shape: f32[128,128], index: 0, kind: input, shape index: {}]
  %s1 = inlined_call_operand.hbm [shape: f32[128,128], index: 1, kind: input, shape index: {}]
  %s2 = inlined_call_operand.hbm [shape: bf16[128,128], index: 2, kind: input, shape index: {}]
  %s3 = inlined_call_operand.vmem [shape: f32[1,128], index: 3, kind: input, shape index: {}]
  %s4 = inlined_call_operand.vmem [shape: f32[1,128], index: 4, kind: input, shape index: {}]
  %s5 = inlined_call_operand.vmem [shape: f32[1,128], index: 5, kind: input, shape index: {}]
  %s6 = inlined_call_operand.hbm [shape: f32[128,128], index: 6, kind: output, shape index: {}]
  %s7 = sld [smem:[#allocation0]]
  $region46: #{tpu_custom_call.1} parent=0
    _
  %s9 = ssub.s32 1, %s7
  %s10 = scalar_select 0, %s9, %s7
  $region1: #{tpu_custom_call.1} parent=0
    #allocation2 [shape = 'u8[65536]{0}', space=vmem, size = 0x10000, scoped, tag = 'input window, operand 0, single buffered']
    #allocation3 [shape = 's32[1]{0}', space=sflag, size = 0x4, scoped, tag = 'scoped memory for tpu_custom_call.1']
    #allocation4 [shape = 's32[1]{0}', space=sflag, size = 0x4, scoped, tag = 'scoped memory for tpu_custom_call.1']
    #allocation5 [shape = 'u8[65536]{0}', space=vmem, size = 0x10000, scoped, tag = 'input window, operand 1, single buffered']
    #allocation6 [shape = 's32[1]{0}', space=sflag, size = 0x4, scoped, tag = 'scoped memory for tpu_custom_call.1']
    #allocation7 [shape = 'u8[32768]{0}', space=vmem, size = 0x8000, scoped, tag = 'input window, operand 2, single buffered']
    #allocation8 [shape = 'u8[65536]{0}', space=vmem, size = 0x10000, scoped, tag = 'output window, operand 0, single buffered']
    %11 = vsyncpa [#allocation3], 0
    %12 = vsyncpa [#allocation6], 0
    %13 = vsyncpa [#allocation4], 0
    // Predicated region
    $region2: #{tpu_custom_call.1} parent=1 // pred_check
      _
    $region3: #{tpu_custom_call.1} parent=1 // pred_check_branch
      %15 = sbr.rel (0) target = $region5
    $region4: #{tpu_custom_call.1} parent=1 // pred_region
      %s17 = ssub.s32 2048, 2048
      %18 = vsyncadd [#allocation3], %s17
      %s19 = sshll.u32 [#allocation2], 4
      %s20 = int_to_ptr.vmem [resolvable:$true] %s19
      %25 = dma.hbm_to_vmem [thread:$0]  %s0, 2048, %s20, [#allocation3], 128, 128, 8
    $region5: #{tpu_custom_call.1} parent=1 // pred_fallthru
      _
    // Predicated region
    $region6: #{tpu_custom_call.1} parent=1 // pred_check
      _
    $region7: #{tpu_custom_call.1} parent=1 // pred_check_branch
      %27 = sbr.rel (0) target = $region9
    $region8: #{tpu_custom_call.1} parent=1 // pred_region
      %s29 = ssub.s32 2048, 2048
      %30 = vsyncadd [#allocation6], %s29
      %s31 = sshll.u32 [#allocation5], 4
      %s32 = int_to_ptr.vmem [resolvable:$true] %s31
      %37 = dma.hbm_to_vmem [thread:$0]  %s1, 2048, %s32, [#allocation6], 128, 128, 8
    $region9: #{tpu_custom_call.1} parent=1 // pred_fallthru
      _
    // Predicated region
    $region10: #{tpu_custom_call.1} parent=1 // pred_check
      _
    $region11: #{tpu_custom_call.1} parent=1 // pred_check_branch
      %39 = sbr.rel (0) target = $region13
    $region12: #{tpu_custom_call.1} parent=1 // pred_region
      %s41 = ssub.s32 1024, 1024
      %42 = vsyncadd [#allocation6], %s41
      %s43 = sshll.u32 [#allocation7], 4
      %s44 = int_to_ptr.vmem [resolvable:$true] %s43
      %49 = dma.hbm_to_vmem [thread:$0]  %s2, 1024, %s44, [#allocation6], 64, 64, 4
    $region13: #{tpu_custom_call.1} parent=1 // pred_fallthru
      _
    // Predicated region
    $region14: #{tpu_custom_call.1} parent=1 // pred_check
      _
    $region15: #{tpu_custom_call.1} parent=1 // pred_check_branch
      %51 = sbr.rel (0) target = $region17
    $region16: #{tpu_custom_call.1} parent=1 // pred_region
      _
    $region17: #{tpu_custom_call.1} parent=1 // pred_fallthru
      _
    // Predicated region
    $region18: #{tpu_custom_call.1} parent=1 // pred_check
      _
    $region19: #{tpu_custom_call.1} parent=1 // pred_check_branch
      %53 = sbr.rel (0) target = $region21
    $region20: #{tpu_custom_call.1} parent=1 // pred_region
      _
    $region21: #{tpu_custom_call.1} parent=1 // pred_fallthru
      _
    // Predicated region
    $region22: #{tpu_custom_call.1} parent=1 // pred_check
      _
    $region23: #{tpu_custom_call.1} parent=1 // pred_check_branch
      %55 = sbr.rel (0) target = $region25
    $region24: #{tpu_custom_call.1} parent=1 // pred_region
      _
    $region25: #{tpu_custom_call.1} parent=1 // pred_fallthru
      _
    // Predicated region
    $region26: #{tpu_custom_call.1} parent=1 // pred_check
      _
    $region27: #{tpu_custom_call.1} parent=1 // pred_check_branch
      %57 = sbr.rel (0) target = $region29
    $region28: #{tpu_custom_call.1} parent=1 // pred_region
      %58 = dma.done [#allocation3], 2048
    $region29: #{tpu_custom_call.1} parent=1 // pred_fallthru
      _
    // Predicated region
    $region30: #{tpu_custom_call.1} parent=1 // pred_check
      _
    $region31: #{tpu_custom_call.1} parent=1 // pred_check_branch
      %60 = sbr.rel (0) target = $region33
    $region32: #{tpu_custom_call.1} parent=1 // pred_region
      %61 = dma.done [#allocation6], 2048
    $region33: #{tpu_custom_call.1} parent=1 // pred_fallthru
      _
    // Predicated region
    $region34: #{tpu_custom_call.1} parent=1 // pred_check
      _
    $region35: #{tpu_custom_call.1} parent=1 // pred_check_branch
      %63 = sbr.rel (0) target = $region37
    $region36: #{tpu_custom_call.1} parent=1 // pred_region
      %64 = dma.done [#allocation6], 1024
    $region37: #{tpu_custom_call.1} parent=1 // pred_fallthru
      _
    %v66 = vld [vmem:[#allocation2] sm:$0xff]
    %v67 = vld [vmem:[#allocation2 + $0x8] sm:$0xff]
    %v68 = vld [vmem:[#allocation2 + $0x10] sm:$0xff]
    %v69 = vld [vmem:[#allocation2 + $0x18] sm:$0xff]
    %v70 = vld [vmem:[#allocation2 + $0x20] sm:$0xff]
    %v71 = vld [vmem:[#allocation2 + $0x28] sm:$0xff]
    %v72 = vld [vmem:[#allocation2 + $0x30] sm:$0xff]
    %v73 = vld [vmem:[#allocation2 + $0x38] sm:$0xff]
    %v74 = vld [vmem:[#allocation2 + $0x40] sm:$0xff]
    %v75 = vld [vmem:[#allocation2 + $0x48] sm:$0xff]
    %v76 = vld [vmem:[#allocation2 + $0x50] sm:$0xff]
    %v77 = vld [vmem:[#allocation2 + $0x58] sm:$0xff]
    %v78 = vld [vmem:[#allocation2 + $0x60] sm:$0xff]
    %v79 = vld [vmem:[#allocation2 + $0x68] sm:$0xff]
    %v80 = vld [vmem:[#allocation2 + $0x70] sm:$0xff]
    %v81 = vld [vmem:[#allocation2 + $0x78] sm:$0xff]
    %v82 = vpack.c.bf16 %v67, %v66
    %v83 = vpack.c.bf16 %v69, %v68
    %v84 = vpack.c.bf16 %v71, %v70
    %v85 = vpack.c.bf16 %v73, %v72
    %v86 = vpack.c.bf16 %v75, %v74
    %v87 = vpack.c.bf16 %v77, %v76
    %v88 = vpack.c.bf16 %v79, %v78
    %v89 = vpack.c.bf16 %v81, %v80
    %v90 = vld [vmem:[#allocation7] sm:$0xf]
    %v91 = vld [vmem:[#allocation7 + $0x4] sm:$0xf]
    %v92 = vld [vmem:[#allocation7 + $0x8] sm:$0xf]
    %v93 = vld [vmem:[#allocation7 + $0xc] sm:$0xf]
    %v94 = vld [vmem:[#allocation7 + $0x10] sm:$0xf]
    %v95 = vld [vmem:[#allocation7 + $0x14] sm:$0xf]
    %v96 = vld [vmem:[#allocation7 + $0x18] sm:$0xf]
    %v97 = vld [vmem:[#allocation7 + $0x1c] sm:$0xf]
    %v98 = vld [vmem:[#allocation7 + $0x20] sm:$0xf]
    %v99 = vld [vmem:[#allocation7 + $0x24] sm:$0xf]
    %v100 = vld [vmem:[#allocation7 + $0x28] sm:$0xf]
    %v101 = vld [vmem:[#allocation7 + $0x2c] sm:$0xf]
    %v102 = vld [vmem:[#allocation7 + $0x30] sm:$0xf]
    %v103 = vld [vmem:[#allocation7 + $0x34] sm:$0xf]
    %v104 = vld [vmem:[#allocation7 + $0x38] sm:$0xf]
    %v105 = vld [vmem:[#allocation7 + $0x3c] sm:$0xf]
    %v106 = vld [vmem:[%s3] sm:$0x1]
    %v108 = vlaneseq
    %v109 = vshrl.u32 %v108, 7
    %v110 = vsub.s32 0, %v109
    %v111 = vrot.slane %v106, %v110
    %v129 = vunpack.c.l.b16 %v90
    %v130 = vunpack.c.l.b16 %v91
    %v131 = vunpack.c.l.b16 %v92
    %v132 = vunpack.c.l.b16 %v93
    %v133 = vunpack.c.l.b16 %v94
    %v134 = vunpack.c.l.b16 %v95
    %v135 = vunpack.c.l.b16 %v96
    %v136 = vunpack.c.l.b16 %v97
    %v137 = vunpack.c.l.b16 %v98
    %v138 = vunpack.c.l.b16 %v99
    %v139 = vunpack.c.l.b16 %v100
    %v140 = vunpack.c.l.b16 %v101
    %v141 = vunpack.c.l.b16 %v102
    %v142 = vunpack.c.l.b16 %v103
    %v143 = vunpack.c.l.b16 %v104
    %v144 = vunpack.c.l.b16 %v105
    %v145 = vpack.c.b16 %v130, %v129
    %v146 = vpack.c.b16 %v132, %v131
    %v147 = vpack.c.b16 %v134, %v133
    %v148 = vpack.c.b16 %v136, %v135
    %v149 = vpack.c.b16 %v138, %v137
    %v150 = vpack.c.b16 %v140, %v139
    %v151 = vpack.c.b16 %v142, %v141
    %v152 = vpack.c.b16 %v144, %v143
    %161 = vmatprep.subr.bf16.mxu0 0
    %162 = vmatpush1.bf16.msra.mxu0 %v152
    %163 = vmatprep.subr.bf16.mxu0 0
    %164 = vmatpush1.bf16.msra.mxu0 %v151
    %165 = vmatprep.subr.bf16.mxu0 0
    %166 = vmatpush1.bf16.msra.mxu0 %v150
    %167 = vmatprep.subr.bf16.mxu0 0
    %168 = vmatpush1.bf16.msra.mxu0 %v149
    %169 = vmatprep.subr.bf16.mxu0 0
    %170 = vmatpush1.bf16.msra.mxu0 %v148
    %171 = vmatprep.subr.bf16.mxu0 0
    %172 = vmatpush1.bf16.msra.mxu0 %v147
    %173 = vmatprep.subr.bf16.mxu0 0
    %174 = vmatpush1.bf16.msra.mxu0 %v146
    %175 = vmatprep.subr.bf16.mxu0 0
    %176 = vmatpush1.bf16.msra.mxu0 %v145
    %177 = vmatprep.subr.bf16.mxu0 0
    %178 = vmatpush2.bf16.msra.mxu0 0
    %179 = vmatprep.subr.bf16.mxu0 0
    %180 = vmatpush2.bf16.msra.mxu0 0
    %181 = vmatprep.subr.bf16.mxu0 0
    %182 = vmatpush2.bf16.msra.mxu0 0
    %183 = vmatprep.subr.bf16.mxu0 0
    %184 = vmatpush2.bf16.msra.mxu0 0
    %185 = vmatprep.subr.bf16.mxu0 0
    %186 = vmatpush2.bf16.msra.mxu0 0
    %187 = vmatprep.subr.bf16.mxu0 0
    %188 = vmatpush2.bf16.msra.mxu0 0
    %189 = vmatprep.subr.bf16.mxu0 0
    %190 = vmatpush2.bf16.msra.mxu0 0
    %191 = vmatprep.subr.bf16.mxu0 0
    %192 = vmatpush2.bf16.msra.mxu0 0
    %193 = vmatprep.mubr.bf16.mxu0 0
    %194 = vmatmul.mubr.bf16.gmra.mxu0 %v82
    %v195 = vpop.f32.mrf.mxu0
    %v196 = vadd.f32 %v111, %v195
    %v197 = vpop.f32.mrf.mxu0
    %v198 = vpop.f32.mrf.mxu0
    %v199 = vadd.f32 %v111, %v198
    %v200 = vpop.f32.mrf.mxu0
    %201 = vmatprep.mubr.bf16.mxu0 0
    %202 = vmatmul.mubr.bf16.gmra.mxu0 %v83
    %v203 = vpop.f32.mrf.mxu0
    %v204 = vadd.f32 %v111, %v203
    %v205 = vpop.f32.mrf.mxu0
    %v206 = vpop.f32.mrf.mxu0
    %v207 = vadd.f32 %v111, %v206
    %v208 = vpop.f32.mrf.mxu0
    %209 = vmatprep.mubr.bf16.mxu0 0
    %210 = vmatmul.mubr.bf16.gmra.mxu0 %v84
    %v211 = vpop.f32.mrf.mxu0
    %v212 = vadd.f32 %v111, %v211
    %v213 = vpop.f32.mrf.mxu0
    %v214 = vpop.f32.mrf.mxu0
    %v215 = vadd.f32 %v111, %v214
    %v216 = vpop.f32.mrf.mxu0
    %217 = vmatprep.mubr.bf16.mxu0 0
    %218 = vmatmul.mubr.bf16.gmra.mxu0 %v85
    %v219 = vpop.f32.mrf.mxu0
    %v220 = vadd.f32 %v111, %v219
    %v221 = vpop.f32.mrf.mxu0
    %v222 = vpop.f32.mrf.mxu0
    %v223 = vadd.f32 %v111, %v222
    %v224 = vpop.f32.mrf.mxu0
    %225 = vmatprep.mubr.bf16.mxu0 0
    %226 = vmatmul.mubr.bf16.gmra.mxu0 %v86
    %v227 = vpop.f32.mrf.mxu0
    %v228 = vadd.f32 %v111, %v227
    %v229 = vpop.f32.mrf.mxu0
    %v230 = vpop.f32.mrf.mxu0
    %v231 = vadd.f32 %v111, %v230
    %v232 = vpop.f32.mrf.mxu0
    %233 = vmatprep.mubr.bf16.mxu0 0
    %234 = vmatmul.mubr.bf16.gmra.mxu0 %v87
    %v235 = vpop.f32.mrf.mxu0
    %v236 = vadd.f32 %v111, %v235
    %v237 = vpop.f32.mrf.mxu0
    %v238 = vpop.f32.mrf.mxu0
    %v239 = vadd.f32 %v111, %v238
    %v240 = vpop.f32.mrf.mxu0
    %241 = vmatprep.mubr.bf16.mxu0 0
    %242 = vmatmul.mubr.bf16.gmra.mxu0 %v88
    %v243 = vpop.f32.mrf.mxu0
    %v244 = vadd.f32 %v111, %v243
    %v245 = vpop.f32.mrf.mxu0
    %v246 = vpop.f32.mrf.mxu0
    %v247 = vadd.f32 %v111, %v246
    %v248 = vpop.f32.mrf.mxu0
    %249 = vmatprep.mubr.bf16.mxu0 0
    %250 = vmatmul.mubr.bf16.gmra.mxu0 %v89
    %v251 = vpop.f32.mrf.mxu0
    %v252 = vadd.f32 %v111, %v251
    %v253 = vpop.f32.mrf.mxu0
    %v254 = vpop.f32.mrf.mxu0
    %v255 = vadd.f32 %v111, %v254
    %v256 = vpop.f32.mrf.mxu0
    %257 = vdwg.mxu0
    %v258 = vld [vmem:[#allocation5] sm:$0xff]
    %v259 = vld [vmem:[#allocation5 + $0x8] sm:$0xff]
    %v260 = vld [vmem:[#allocation5 + $0x10] sm:$0xff]
    %v261 = vld [vmem:[#allocation5 + $0x18] sm:$0xff]
    %v262 = vld [vmem:[#allocation5 + $0x20] sm:$0xff]
    %v263 = vld [vmem:[#allocation5 + $0x28] sm:$0xff]
    %v264 = vld [vmem:[#allocation5 + $0x30] sm:$0xff]
    %v265 = vld [vmem:[#allocation5 + $0x38] sm:$0xff]
    %v266 = vld [vmem:[#allocation5 + $0x40] sm:$0xff]
    %v267 = vld [vmem:[#allocation5 + $0x48] sm:$0xff]
    %v268 = vld [vmem:[#allocation5 + $0x50] sm:$0xff]
    %v269 = vld [vmem:[#allocation5 + $0x58] sm:$0xff]
    %v270 = vld [vmem:[#allocation5 + $0x60] sm:$0xff]
    %v271 = vld [vmem:[#allocation5 + $0x68] sm:$0xff]
    %v272 = vld [vmem:[#allocation5 + $0x70] sm:$0xff]
    %v273 = vld [vmem:[#allocation5 + $0x78] sm:$0xff]
    %v274 = vmul.f32 %v196, %v258
    %v275 = vmul.f32 %v199, %v259
    %v276 = vmul.f32 %v204, %v260
    %v277 = vmul.f32 %v207, %v261
    %v278 = vmul.f32 %v212, %v262
    %v279 = vmul.f32 %v215, %v263
    %v280 = vmul.f32 %v220, %v264
    %v281 = vmul.f32 %v223, %v265
    %v282 = vmul.f32 %v228, %v266
    %v283 = vmul.f32 %v231, %v267
    %v284 = vmul.f32 %v236, %v268
    %v285 = vmul.f32 %v239, %v269
    %v286 = vmul.f32 %v244, %v270
    %v287 = vmul.f32 %v247, %v271
    %v288 = vmul.f32 %v252, %v272
    %v289 = vmul.f32 %v255, %v273
    %v290 = vadd.f32 %v66, %v274
    %v291 = vadd.f32 %v67, %v275
    %v292 = vadd.f32 %v68, %v276
    %v293 = vadd.f32 %v69, %v277
    %v294 = vadd.f32 %v70, %v278
    %v295 = vadd.f32 %v71, %v279
    %v296 = vadd.f32 %v72, %v280
    %v297 = vadd.f32 %v73, %v281
    %v298 = vadd.f32 %v74, %v282
    %v299 = vadd.f32 %v75, %v283
    %v300 = vadd.f32 %v76, %v284
    %v301 = vadd.f32 %v77, %v285
    %v302 = vadd.f32 %v78, %v286
    %v303 = vadd.f32 %v79, %v287
    %v304 = vadd.f32 %v80, %v288
    %v305 = vadd.f32 %v81, %v289
    %306 = vadd.xlane.f32.xlu0 %v290
    %v307 = vpop.xlane.xlu0 %306
    %308 = vadd.xlane.f32.xlu0 %v291
    %v309 = vpop.xlane.xlu0 %308
    %310 = vadd.xlane.f32.xlu0 %v292
    %v311 = vpop.xlane.xlu0 %310
    %312 = vadd.xlane.f32.xlu0 %v293
    %v313 = vpop.xlane.xlu0 %312
    %314 = vadd.xlane.f32.xlu0 %v294
    %v315 = vpop.xlane.xlu0 %314
    %316 = vadd.xlane.f32.xlu0 %v295
    %v317 = vpop.xlane.xlu0 %316
    %318 = vadd.xlane.f32.xlu0 %v296
    %v319 = vpop.xlane.xlu0 %318
    %320 = vadd.xlane.f32.xlu0 %v297
    %v321 = vpop.xlane.xlu0 %320
    %322 = vadd.xlane.f32.xlu0 %v298
    %v323 = vpop.xlane.xlu0 %322
    %324 = vadd.xlane.f32.xlu0 %v299
    %v325 = vpop.xlane.xlu0 %324
    %326 = vadd.xlane.f32.xlu0 %v300
    %v327 = vpop.xlane.xlu0 %326
    %328 = vadd.xlane.f32.xlu0 %v301
    %v329 = vpop.xlane.xlu0 %328
    %330 = vadd.xlane.f32.xlu0 %v302
    %v331 = vpop.xlane.xlu0 %330
    %332 = vadd.xlane.f32.xlu0 %v303
    %v333 = vpop.xlane.xlu0 %332
    %334 = vadd.xlane.f32.xlu0 %v304
    %v335 = vpop.xlane.xlu0 %334
    %336 = vadd.xlane.f32.xlu0 %v305
    %v337 = vpop.xlane.xlu0 %336
    %v338 = vrcp.pop 128.0
    %v339 = vmul.f32 %v307, %v338
    %v340 = vmul.f32 %v309, %v338
    %v341 = vmul.f32 %v311, %v338
    %v342 = vmul.f32 %v313, %v338
    %v343 = vmul.f32 %v315, %v338
    %v344 = vmul.f32 %v317, %v338
    %v345 = vmul.f32 %v319, %v338
    %v346 = vmul.f32 %v321, %v338
    %v347 = vmul.f32 %v323, %v338
    %v348 = vmul.f32 %v325, %v338
    %v349 = vmul.f32 %v327, %v338
    %v350 = vmul.f32 %v329, %v338
    %v351 = vmul.f32 %v331, %v338
    %v352 = vmul.f32 %v333, %v338
    %v353 = vmul.f32 %v335, %v338
    %v354 = vmul.f32 %v337, %v338
    %v355 = vsub.f32 %v290, %v339
    %v356 = vsub.f32 %v291, %v340
    %v357 = vsub.f32 %v292, %v341
    %v358 = vsub.f32 %v293, %v342
    %v359 = vsub.f32 %v294, %v343
    %v360 = vsub.f32 %v295, %v344
    %v361 = vsub.f32 %v296, %v345
    %v362 = vsub.f32 %v297, %v346
    %v363 = vsub.f32 %v298, %v347
    %v364 = vsub.f32 %v299, %v348
    %v365 = vsub.f32 %v300, %v349
    %v366 = vsub.f32 %v301, %v350
    %v367 = vsub.f32 %v302, %v351
    %v368 = vsub.f32 %v303, %v352
    %v369 = vsub.f32 %v304, %v353
    %v370 = vsub.f32 %v305, %v354
    %v371 = vmul.f32 %v355, %v355
    %v372 = vmul.f32 %v356, %v356
    %v373 = vmul.f32 %v357, %v357
    %v374 = vmul.f32 %v358, %v358
    %v375 = vmul.f32 %v359, %v359
    %v376 = vmul.f32 %v360, %v360
    %v377 = vmul.f32 %v361, %v361
    %v378 = vmul.f32 %v362, %v362
    %v379 = vmul.f32 %v363, %v363
    %v380 = vmul.f32 %v364, %v364
    %v381 = vmul.f32 %v365, %v365
    %v382 = vmul.f32 %v366, %v366
    %v383 = vmul.f32 %v367, %v367
    %v384 = vmul.f32 %v368, %v368
    %v385 = vmul.f32 %v369, %v369
    %v386 = vmul.f32 %v370, %v370
    %387 = vadd.xlane.f32.xlu0 %v371
    %v388 = vpop.xlane.xlu0 %387
    %389 = vadd.xlane.f32.xlu0 %v372
    %v390 = vpop.xlane.xlu0 %389
    %391 = vadd.xlane.f32.xlu0 %v373
    %v392 = vpop.xlane.xlu0 %391
    %393 = vadd.xlane.f32.xlu0 %v374
    %v394 = vpop.xlane.xlu0 %393
    %395 = vadd.xlane.f32.xlu0 %v375
    %v396 = vpop.xlane.xlu0 %395
    %397 = vadd.xlane.f32.xlu0 %v376
    %v398 = vpop.xlane.xlu0 %397
    %399 = vadd.xlane.f32.xlu0 %v377
    %v400 = vpop.xlane.xlu0 %399
    %401 = vadd.xlane.f32.xlu0 %v378
    %v402 = vpop.xlane.xlu0 %401
    %403 = vadd.xlane.f32.xlu0 %v379
    %v404 = vpop.xlane.xlu0 %403
    %405 = vadd.xlane.f32.xlu0 %v380
    %v406 = vpop.xlane.xlu0 %405
    %407 = vadd.xlane.f32.xlu0 %v381
    %v408 = vpop.xlane.xlu0 %407
    %409 = vadd.xlane.f32.xlu0 %v382
    %v410 = vpop.xlane.xlu0 %409
    %411 = vadd.xlane.f32.xlu0 %v383
    %v412 = vpop.xlane.xlu0 %411
    %413 = vadd.xlane.f32.xlu0 %v384
    %v414 = vpop.xlane.xlu0 %413
    %415 = vadd.xlane.f32.xlu0 %v385
    %v416 = vpop.xlane.xlu0 %415
    %417 = vadd.xlane.f32.xlu0 %v386
    %v418 = vpop.xlane.xlu0 %417
    %v419 = vmul.f32 %v388, %v338
    %v420 = vmul.f32 %v390, %v338
    %v421 = vmul.f32 %v392, %v338
    %v422 = vmul.f32 %v394, %v338
    %v423 = vmul.f32 %v396, %v338
    %v424 = vmul.f32 %v398, %v338
    %v425 = vmul.f32 %v400, %v338
    %v426 = vmul.f32 %v402, %v338
    %v427 = vmul.f32 %v404, %v338
    %v428 = vmul.f32 %v406, %v338
    %v429 = vmul.f32 %v408, %v338
    %v430 = vmul.f32 %v410, %v338
    %v431 = vmul.f32 %v412, %v338
    %v432 = vmul.f32 %v414, %v338
    %v433 = vmul.f32 %v416, %v338
    %v434 = vmul.f32 %v418, %v338
    %v435 = vadd.f32 %v419, 1e-05
    %v436 = vadd.f32 %v420, 1e-05
    %v437 = vadd.f32 %v421, 1e-05
    %v438 = vadd.f32 %v422, 1e-05
    %v439 = vadd.f32 %v423, 1e-05
    %v440 = vadd.f32 %v424, 1e-05
    %v441 = vadd.f32 %v425, 1e-05
    %v442 = vadd.f32 %v426, 1e-05
    %v443 = vadd.f32 %v427, 1e-05
    %v444 = vadd.f32 %v428, 1e-05
    %v445 = vadd.f32 %v429, 1e-05
    %v446 = vadd.f32 %v430, 1e-05
    %v447 = vadd.f32 %v431, 1e-05
    %v448 = vadd.f32 %v432, 1e-05
    %v449 = vadd.f32 %v433, 1e-05
    %v450 = vadd.f32 %v434, 1e-05
    %v451 = vrsqrt.pop %v435
    %v452 = vrsqrt.pop %v436
    %v453 = vrsqrt.pop %v437
    %v454 = vrsqrt.pop %v438
    %v455 = vrsqrt.pop %v439
    %v456 = vrsqrt.pop %v440
    %v457 = vrsqrt.pop %v441
    %v458 = vrsqrt.pop %v442
    %v459 = vrsqrt.pop %v443
    %v460 = vrsqrt.pop %v444
    %v461 = vrsqrt.pop %v445
    %v462 = vrsqrt.pop %v446
    %v463 = vrsqrt.pop %v447
    %v464 = vrsqrt.pop %v448
    %v465 = vrsqrt.pop %v449
    %v466 = vrsqrt.pop %v450
    %v467 = vmul.f32 %v355, %v451
    %v468 = vmul.f32 %v356, %v452
    %v469 = vmul.f32 %v357, %v453
    %v470 = vmul.f32 %v358, %v454
    %v471 = vmul.f32 %v359, %v455
    %v472 = vmul.f32 %v360, %v456
    %v473 = vmul.f32 %v361, %v457
    %v474 = vmul.f32 %v362, %v458
    %v475 = vmul.f32 %v363, %v459
    %v476 = vmul.f32 %v364, %v460
    %v477 = vmul.f32 %v365, %v461
    %v478 = vmul.f32 %v366, %v462
    %v479 = vmul.f32 %v367, %v463
    %v480 = vmul.f32 %v368, %v464
    %v481 = vmul.f32 %v369, %v465
    %v482 = vmul.f32 %v370, %v466
    %v483 = vld [vmem:[%s4] sm:$0x1]
    %v485 = vlaneseq
    %v486 = vshrl.u32 %v485, 7
    %v487 = vsub.s32 0, %v486
    %v488 = vrot.slane %v483, %v487
    %v490 = vmul.f32 %v467, %v488
    %v491 = vmul.f32 %v468, %v488
    %v492 = vmul.f32 %v469, %v488
    %v493 = vmul.f32 %v470, %v488
    %v494 = vmul.f32 %v471, %v488
    %v495 = vmul.f32 %v472, %v488
    %v496 = vmul.f32 %v473, %v488
    %v497 = vmul.f32 %v474, %v488
    %v498 = vmul.f32 %v475, %v488
    %v499 = vmul.f32 %v476, %v488
    %v500 = vmul.f32 %v477, %v488
    %v501 = vmul.f32 %v478, %v488
    %v502 = vmul.f32 %v479, %v488
    %v503 = vmul.f32 %v480, %v488
    %v504 = vmul.f32 %v481, %v488
    %v505 = vmul.f32 %v482, %v488
    %v506 = vld [vmem:[%s5] sm:$0x1]
    %v508 = vlaneseq
    %v509 = vshrl.u32 %v508, 7
    %v510 = vsub.s32 0, %v509
    %v511 = vrot.slane %v506, %v510
    %v513 = vadd.f32 %v490, %v511
    %v514 = vadd.f32 %v491, %v511
    %v515 = vadd.f32 %v492, %v511
    %v516 = vadd.f32 %v493, %v511
    %v517 = vadd.f32 %v494, %v511
    %v518 = vadd.f32 %v495, %v511
    %v519 = vadd.f32 %v496, %v511
    %v520 = vadd.f32 %v497, %v511
    %v521 = vadd.f32 %v498, %v511
    %v522 = vadd.f32 %v499, %v511
    %v523 = vadd.f32 %v500, %v511
    %v524 = vadd.f32 %v501, %v511
    %v525 = vadd.f32 %v502, %v511
    %v526 = vadd.f32 %v503, %v511
    %v527 = vadd.f32 %v504, %v511
    %v528 = vadd.f32 %v505, %v511
    %529 = vst [vmem:[#allocation8] sm:$0xff] %v513
    %530 = vst [vmem:[#allocation8 + $0x8] sm:$0xff] %v514
    %531 = vst [vmem:[#allocation8 + $0x10] sm:$0xff] %v515
    %532 = vst [vmem:[#allocation8 + $0x18] sm:$0xff] %v516
    %533 = vst [vmem:[#allocation8 + $0x20] sm:$0xff] %v517
    %534 = vst [vmem:[#allocation8 + $0x28] sm:$0xff] %v518
    %535 = vst [vmem:[#allocation8 + $0x30] sm:$0xff] %v519
    %536 = vst [vmem:[#allocation8 + $0x38] sm:$0xff] %v520
    %537 = vst [vmem:[#allocation8 + $0x40] sm:$0xff] %v521
    %538 = vst [vmem:[#allocation8 + $0x48] sm:$0xff] %v522
    %539 = vst [vmem:[#allocation8 + $0x50] sm:$0xff] %v523
    %540 = vst [vmem:[#allocation8 + $0x58] sm:$0xff] %v524
    %541 = vst [vmem:[#allocation8 + $0x60] sm:$0xff] %v525
    %542 = vst [vmem:[#allocation8 + $0x68] sm:$0xff] %v526
    %543 = vst [vmem:[#allocation8 + $0x70] sm:$0xff] %v527
    %544 = vst [vmem:[#allocation8 + $0x78] sm:$0xff] %v528
    // Predicated region
    $region38: #{tpu_custom_call.1} parent=1 // pred_check
      _
    $region39: #{tpu_custom_call.1} parent=1 // pred_check_branch
      %546 = sbr.rel (0) target = $region41
    $region40: #{tpu_custom_call.1} parent=1 // pred_region
      %s548 = ssub.s32 2048, 2048
      %549 = vsyncadd [#allocation4], %s548
      %s550 = sshll.u32 [#allocation8], 4
      %s551 = int_to_ptr.vmem [resolvable:$true] %s550
      %556 = dma.vmem_to_hbm [thread:$0]  %s551, 2048, %s6, [#allocation4], 128, 128, 8
    $region41: #{tpu_custom_call.1} parent=1 // pred_fallthru
      _
    // Predicated region
    $region42: #{tpu_custom_call.1} parent=1 // pred_check
      _
    $region43: #{tpu_custom_call.1} parent=1 // pred_check_branch
      %558 = sbr.rel (0) target = $region45
    $region44: #{tpu_custom_call.1} parent=1 // pred_region
      %559 = dma.done [#allocation4], 2048
    $region45: #{tpu_custom_call.1} parent=1 // pred_fallthru
      _
    %560 = vsyncpa [#allocation3], 1
    %561 = vsyncpa [#allocation6], 1
    %562 = vsyncpa [#allocation4], 1

</llo_original>
